<compile_context>
chip_gen: v6e
topology: v6e:2x2x1
jax: 0.10.0
libtpu: 0.0.40
codegen_flags: <defaults>
</compile_context>

<pallas_src>
import jax
import jax.numpy as jnp
from jax.experimental import pallas as pl
from jax.experimental.pallas import tpu as pltpu


def _round_up(x, m):
    return ((x + m - 1) // m) * m


def _embed_kernel(patch_ref, wt_ref, posb_ref, out_ref):
    # patch_ref: (1, TM, Kp) bf16  one row tile of one image (row 0 of the sequence
    #                              is the all-zero "cls patch"; tail rows are pad)
    # wt_ref   : (Kp, Hp)    bf16  projection weight, transposed + zero padded
    # posb_ref : (TM, Hp)    f32   row-additive table: cls+pos[0] / bias+pos[1:]
    # out_ref  : (1, TM, Hp) bf16  embedded rows (cls row included)
    proj = jnp.dot(patch_ref[0], wt_ref[...],
                   preferred_element_type=jnp.float32)          # MXU bf16 in / f32 acc
    out_ref[0, :, :] = (proj + posb_ref[...]).astype(out_ref.dtype)  # f32 add on VPU
    # TODO(synk): dropout is identity in eval mode / prob=0.0; training-mode dropout
    # would use pltpu.prng_seed / pltpu.prng_random_bits here.


def embeddings_forward(x, w_proj, b_proj, cls_token, pos_emb, patch_size,
                       out_dtype=jnp.bfloat16):
    """x: (B, C, H, W) f32 NCHW image. Returns (B, num_patches+1, hidden) in out_dtype."""
    B, C, H, W = x.shape
    P = patch_size
    if H % P or W % P:
        raise ValueError("image size must be a multiple of patch_size")
    nH, nW = H // P, W // P
    Np = nH * nW
    hidden = w_proj.shape[0]
    K = C * P * P
    R = Np + 1                                            # +1 for the cls row

    # --- glue: non-overlapping patch extraction (C, ph, pw order = Conv2d weight) ---
    # TODO(synk): with an NHWC input + init-time weight permute this transpose (one
    # extra HBM pass) folds away; the patch gather could also move in-kernel via an
    # image BlockSpec over (b, nH) row slabs.
    patches = x.reshape(B, C, nH, P, nW, P).transpose(0, 2, 4, 1, 3, 5)
    patches = patches.reshape(B, Np, K)

    # --- MXU / layout friendly sizes ---
    Kp = _round_up(K, 128)
    Hp = _round_up(hidden, 128)
    if R <= 512:
        TM = _round_up(R, 16)             # one tile per image, bf16-sublane aligned
    else:
        TM = 256                          # full-height 256x256 MXU tile (v6e/v7x)
    if B * (_round_up(R, TM) // TM) < 2 and R > 16:
        TM = _round_up(-(-R // 2), 16)    # guarantee >=2 parallel steps (v7x, 2 TCs)
    Rp = _round_up(R, TM)
    T = Rp // TM

    # bf16 MXU operands; row 0 is the all-zero "cls patch", trailing rows are pad.
    patches_b = jnp.pad(patches.astype(jnp.bfloat16),
                        ((0, 0), (1, Rp - Np - 1), (0, Kp - K)))

    wt = w_proj.reshape(hidden, K).T.astype(jnp.bfloat16)             # (K, hidden)
    if (Kp, Hp) != (K, hidden):
        wt = jnp.pad(wt, ((0, Kp - K), (0, Hp - hidden)))

    pos = pos_emb.reshape(R, hidden).astype(jnp.float32)
    posb = jnp.concatenate(
        [cls_token.reshape(1, hidden).astype(jnp.float32) + pos[:1],  # row 0: cls+pos0
         pos[1:] + b_proj.reshape(1, hidden).astype(jnp.float32)],    # rows: bias+pos
        axis=0)                                                       # (R, hidden) f32
    if (Rp, Hp) != (R, hidden):
        posb = jnp.pad(posb, ((0, Rp - R), (0, Hp - hidden)))

    # --- VMEM budget (double-buffered tiles) + honest DMA byte count ---
    need = (2 * TM * Kp * 2        # patch tile (bf16, x2 buffers)
            + 2 * Kp * Hp * 2      # weight (bf16); TODO(synk): pl.Buffered(1) where supported
            + 2 * TM * Hp * 4      # pos/bias tile (f32)
            + 2 * TM * Hp * 2      # output tile (bf16)
            + (1 << 20))           # slack
    vmem_limit = int(min(32 << 20, max(need + (2 << 20), 8 << 20)))   # <=32 MiB: v7x-safe
    cost = pl.CostEstimate(
        flops=2 * B * Rp * Kp * Hp,
        transcendentals=0,
        bytes_accessed=(B * Rp * Kp * 2      # patches read (every grid step)
                        + Kp * Hp * 2        # weight read once (resident)
                        + Rp * Hp * 4        # pos/bias read T times (outer axis only)
                        + B * Rp * Hp * 2))  # bf16 output writeback

    out = pl.pallas_call(
        _embed_kernel,
        out_shape=jax.ShapeDtypeStruct((B, Rp, Hp), out_dtype),
        grid_spec=pltpu.PrefetchScalarGridSpec(
            num_scalar_prefetch=0,
            grid=(T, B),                      # row tiles outer -> posb DMA'd T times
            in_specs=[
                pl.BlockSpec((1, TM, Kp), lambda t, b: (b, t, 0)),    # patches
                pl.BlockSpec((Kp, Hp), lambda t, b: (0, 0)),          # W^T (resident)
                pl.BlockSpec((TM, Hp), lambda t, b: (t, 0)),          # cls/bias + pos
            ],
            out_specs=pl.BlockSpec((1, TM, Hp), lambda t, b: (b, t, 0)),
        ),
        compiler_params=pltpu.CompilerParams(
            dimension_semantics=("parallel", "parallel"),
            vmem_limit_bytes=vmem_limit),
        cost_estimate=cost,
    )(patches_b, wt, posb)

    if (Rp, Hp) != (R, hidden):
        out = out[:, :R, :hidden]
    return out


def reference_forward(x, w_proj, b_proj, cls_token, pos_emb, patch_size):
    """Pure-JAX f32 reference mirroring the PyTorch forward (eval mode)."""
    B, C, H, W = x.shape
    P = patch_size
    nH, nW = H // P, W // P
    Np = nH * nW
    hidden = w_proj.shape[0]
    patches = x.reshape(B, C, nH, P, nW, P).transpose(0, 2, 4, 1, 3, 5)
    patches = patches.reshape(B, Np, C * P * P)
    proj = jnp.einsum("bnk,hk->bnh", patches, w_proj.reshape(hidden, -1)) + b_proj
    cls = jnp.broadcast_to(cls_token.reshape(1, 1, hidden), (B, 1, hidden))
    return jnp.concatenate([cls, proj], axis=1) + pos_emb.reshape(1, Np + 1, hidden)


if __name__ == "__main__":
    # Small ViT-style config: image 16x16, patches 4x4 -> 16 patches, hidden 32.
    config = dict(image_size=16, patch_size=4, num_channels=4,
                  hidden_size=32, hidden_dropout_prob=0.0)
    B = 2
    C = config["num_channels"]
    S = config["image_size"]
    P = config["patch_size"]
    Hd = config["hidden_size"]
    Np = (S // P) ** 2

    key = jax.random.PRNGKey(0)
    kx, kw, kb, kc, kp = jax.random.split(key, 5)
    x = jax.random.normal(kx, (B, C, S, S), dtype=jnp.float32)
    w_proj = jax.random.normal(kw, (Hd, C, P, P), dtype=jnp.float32) * 0.02
    b_proj = jax.random.normal(kb, (Hd,), dtype=jnp.float32) * 0.02
    cls_token = jax.random.normal(kc, (1, 1, Hd), dtype=jnp.float32)
    pos_emb = jax.random.normal(kp, (1, Np + 1, Hd), dtype=jnp.float32)

    out = embeddings_forward(x, w_proj, b_proj, cls_token, pos_emb, P)
    out = jax.block_until_ready(out)

    ref = reference_forward(x, w_proj, b_proj, cls_token, pos_emb, P)
    assert out.shape == (B, Np + 1, Hd), out.shape
    # bf16 matmul operands + bf16 output -> compare vs f32 reference at bf16 tolerance.
    assert jnp.allclose(out, ref, atol=3e-2, rtol=3e-2), "mismatch vs reference"
    print("KERNEL_OK")
</pallas_src>

<mosaic_0001>
module attributes {stable_mosaic.version = 11 : i64} {
  func.func @_embed_kernel(%arg0: i32, %arg1: i32, %arg2: memref<1x32x128xbf16, #tpu.memory_space<vmem>>, %arg3: memref<128x128xbf16, #tpu.memory_space<vmem>>, %arg4: memref<32x128xf32, #tpu.memory_space<vmem>>, %arg5: memref<1x32x128xbf16, #tpu.memory_space<vmem>>) attributes {dimension_semantics = [#tpu.dimension_semantics<parallel>, #tpu.dimension_semantics<parallel>], iteration_bounds = array<i64: 1, 2>, scalar_prefetch = 0 : i64, scratch_operands = 0 : i64, tpu.core_type = #tpu.core_type<tc>, window_params = [{transform_indices = @transform_0, window_bounds = array<i64: 1, 32, 128>}, {pipeline_mode = #tpu.pipeline_mode<synchronous>, transform_indices = @transform_1, window_bounds = array<i64: 128, 128>}, {transform_indices = @transform_2, window_bounds = array<i64: 32, 128>}, {transform_indices = @transform_3, window_bounds = array<i64: 1, 32, 128>}]} {
    %c0 = arith.constant 0 : index
    %c0_0 = arith.constant 0 : index
    %c0_1 = arith.constant 0 : index
    %0 = vector.load %arg2[%c0, %c0_0, %c0_1] : memref<1x32x128xbf16, #tpu.memory_space<vmem>>, vector<1x32x128xbf16>
    %1 = vector.shape_cast %0 : vector<1x32x128xbf16> to vector<32x128xbf16>
    %c0_2 = arith.constant 0 : index
    %c0_3 = arith.constant 0 : index
    %2 = vector.load %arg3[%c0_2, %c0_3] : memref<128x128xbf16, #tpu.memory_space<vmem>>, vector<128x128xbf16>
    %cst = arith.constant dense<0.000000e+00> : vector<32x128xf32>
    %3 = tpu.matmul %1, %2, %cst {dimension_numbers = #tpu.dot_dimension_numbers<[1], [0], [0], [1], [0, 0, 1, 1], [], []>} : vector<32x128xbf16>, vector<128x128xbf16>, vector<32x128xf32> -> vector<32x128xf32>
    %c0_4 = arith.constant 0 : index
    %c0_5 = arith.constant 0 : index
    %4 = vector.load %arg4[%c0_4, %c0_5] : memref<32x128xf32, #tpu.memory_space<vmem>>, vector<32x128xf32>
    %5 = arith.addf %3, %4 : vector<32x128xf32>
    %6 = arith.truncf %5 : vector<32x128xf32> to vector<32x128xbf16>
    %c0_6 = arith.constant 0 : index
    %c0_7 = arith.constant 0 : index
    %c0_8 = arith.constant 0 : index
    %7 = vector.load %arg5[%c0_6, %c0_7, %c0_8] : memref<1x32x128xbf16, #tpu.memory_space<vmem>>, vector<1x32x128xbf16>
    %8 = vector.shape_cast %7 : vector<1x32x128xbf16> to vector<32x128xbf16>
    %9 = vector.shape_cast %6 : vector<32x128xbf16> to vector<1x32x128xbf16>
    tpu.vector_store %arg5[%c0_6, %c0_7, %c0_8], %9 {strides = array<i32>} : memref<1x32x128xbf16, #tpu.memory_space<vmem>>, vector<1x32x128xbf16>,
    return
  }
  func.func @transform_0(%arg0: i32, %arg1: i32) -> (i32, i32, i32) {
    %c0_i32 = arith.constant 0 : i32
    %c0_i32_0 = arith.constant 0 : i32
    return %arg1, %arg0, %c0_i32 : i32, i32, i32
  }
  func.func @transform_1(%arg0: i32, %arg1: i32) -> (i32, i32) {
    %c0_i32 = arith.constant 0 : i32
    %c0_i32_0 = arith.constant 0 : i32
    %c0_i32_1 = arith.constant 0 : i32
    return %c0_i32, %c0_i32_0 : i32, i32
  }
  func.func @transform_2(%arg0: i32, %arg1: i32) -> (i32, i32) {
    %c0_i32 = arith.constant 0 : i32
    %c0_i32_0 = arith.constant 0 : i32
    return %arg0, %c0_i32 : i32, i32
  }
  func.func @transform_3(%arg0: i32, %arg1: i32) -> (i32, i32, i32) {
    %c0_i32 = arith.constant 0 : i32
    %c0_i32_0 = arith.constant 0 : i32
    return %arg1, %arg0, %c0_i32 : i32, i32, i32
  }
}

</mosaic_0001>

<llo_original>
// kernel: tpu_custom_call.1
$region0: #{tpu_custom_call.1}
  #allocation0 [shape = 'u32[]', space=smem, size = 0x4, offset = 0x4, fixed_abs, tag = 'smem constant byte address 0x4 - core index']
  #allocation1 [shape = 'u32[144,128]{1,0:T(1,128)}', space=vmem, size = 0x12000, scoped, tag = 'internal scratch']
  %s0 = inlined_call_operand.hbm [shape: bf16[2,32,128], index: 0, kind: input, shape index: {}]
  %s1 = inlined_call_operand.hbm [shape: bf16[128,128], index: 1, kind: input, shape index: {}]
  %s2 = inlined_call_operand.hbm [shape: f32[32,128], index: 2, kind: input, shape index: {}]
  %s3 = inlined_call_operand.hbm [shape: bf16[2,32,128], index: 3, kind: output, shape index: {}]
  %s4 = sld [smem:[#allocation0]]
  $region57: #{tpu_custom_call.1} parent=0
    _
  %s6 = ssub.s32 1, %s4
  %s7 = scalar_select 0, %s6, %s4
  $region1: #{tpu_custom_call.1} parent=0
    #allocation2 [shape = 'u8[16384]{0}', space=vmem, size = 0x4000, scoped, tag = 'input window, operand 0']
    #allocation3 [shape = 's32[2]{0}', space=sflag, size = 0x8, scoped, tag = 'scoped memory for tpu_custom_call.1']
    #allocation4 [shape = 's32[2]{0}', space=sflag, size = 0x8, scoped, tag = 'scoped memory for tpu_custom_call.1']
    #allocation5 [shape = 'u8[32768]{0}', space=vmem, size = 0x8000, scoped, tag = 'input window, operand 1, single buffered']
    #allocation6 [shape = 's32[1]{0}', space=sflag, size = 0x4, scoped, tag = 'scoped memory for tpu_custom_call.1']
    #allocation7 [shape = 'u8[16384]{0}', space=vmem, size = 0x4000, scoped, tag = 'input window, operand 2, single buffered']
    #allocation8 [shape = 'u8[16384]{0}', space=vmem, size = 0x4000, scoped, tag = 'output window, operand 0']
    %8 = vsyncpa [#allocation3], 0
    %s9 = scalar_lea.sflag [#allocation3], 1
    %10 = vsyncpa %s9, 0
    %11 = vsyncpa [#allocation6], 0
    %12 = vsyncpa [#allocation4], 0
    %s13 = scalar_lea.sflag [#allocation4], 1
    %14 = vsyncpa %s13, 0
    loop: start=0, step=1, limit=4
    $region2: #{tpu_custom_call.1} parent=1 // loop_pre_header
      _
    $region3: #{tpu_custom_call.1} parent=1 // loop_header
      %s16 = sphi 0, %s20
      %p17 = scmp.ge.s32.totalorder %s16, 4
      %s23 = sphi 0, %s35
      %s24 = sphi 0, %s31
      %s25 = sphi 0, %s23
      %s26 = sphi 0, %s24
      %s27 = sphi 0, %s25
      %s28 = sphi 0, %s26
      %s40 = sphi 0, %s42
      %s43 = sphi 0, %s40
      %s44 = sphi 0, %s43
      %s60 = sphi 0, %s44
      %s64 = sphi 0, %s64
      %s66 = sphi 0, %s64
      %s67 = sphi 0, %s66
      %s81 = sphi 0, %s67
      %s87 = sphi 0, %s89
      %s90 = sphi 0, %s87
      %s91 = sphi 0, %s90
      %s107 = sphi 0, %s91
      %s115 = sphi 0, %s117
      %s118 = sphi 0, %s115
      %s119 = sphi 0, %s118
      %s135 = sphi 0, %s119
    $region4: #{tpu_custom_call.1} parent=1 // loop_header_branch
      %19 = sbr.rel (%p17) target = $region8
    $region5: #{tpu_custom_call.1} parent=1 // loop_body
      %s21 = ssub.s32 %s16, 1
      %s22 = ssub.s32 %s16, 2
      %s29 = sadd.s32 1, %s24
      %p30 = scmp.ge.s32.totalorder %s29, 2
      %s31 = scalar_select %p30, 0, %s29
      %s32 = sadd.s32 1, %s23
      %s33 = scalar_select %p30, %s32, %s23
      %p34 = scmp.ge.s32.totalorder %s33, 1
      %s35 = scalar_select %p34, 0, %s33
      %s36 = ssub.s32 %s24, %s31
      %s37 = ssub.s32 %s23, %s35
      %s38 = sor.u32 %s36, %s37
      %p39 = scmp.eq.s32.totalorder %s38, 0
      %s41 = sadd.s32 %s40, 1
      %s42 = scalar_select %p39, %s40, %s41
      %p45 = pneg %p39
      %p46 = scmp.eq.s32.totalorder %s16, 1
      %p47 = por %p45, %p46
      %p48 = scmp.ne.s32.totalorder %s40, %s43
      %p49 = scmp.eq.s32.totalorder %s16, 0
      %p50 = por %p48, %p49
      %p51 = scmp.ne.s32.totalorder %s40, %s43
      %p52 = scmp.eq.s32.totalorder %s21, 1
      %p53 = por %p51, %p52
      %p54 = scmp.ne.s32.totalorder %s43, %s44
      %p55 = scmp.eq.s32.totalorder %s21, 0
      %p56 = por %p54, %p55
      %p57 = scmp.ne.s32.totalorder %s43, %s44
      %p58 = scmp.eq.s32.totalorder %s22, 1
      %p59 = por %p57, %p58
      %p61 = scmp.ne.s32.totalorder %s44, %s60
      %p62 = scmp.eq.s32.totalorder %s22, 0
      %p63 = por %p61, %p62
      %s65 = sadd.s32 %s64, 1
      %p68 = scmp.eq.s32.totalorder %s16, 1
      %p69 = scmp.ne.s32.totalorder %s64, %s66
      %p70 = scmp.eq.s32.totalorder %s16, 0
      %p71 = por %p69, %p70
      %p72 = scmp.ne.s32.totalorder %s64, %s66
      %p73 = scmp.eq.s32.totalorder %s21, 1
      %p74 = por %p72, %p73
      %p75 = scmp.ne.s32.totalorder %s66, %s67
      %p76 = scmp.eq.s32.totalorder %s21, 0
      %p77 = por %p75, %p76
      %p78 = scmp.ne.s32.totalorder %s66, %s67
      %p79 = scmp.eq.s32.totalorder %s22, 1
      %p80 = por %p78, %p79
      %p82 = scmp.ne.s32.totalorder %s67, %s81
      %p83 = scmp.eq.s32.totalorder %s22, 0
      %p84 = por %p82, %p83
      %s85 = ssub.s32 %s23, %s35
      %p86 = scmp.eq.s32.totalorder %s85, 0
      %s88 = sadd.s32 %s87, 1
      %s89 = scalar_select %p86, %s87, %s88
      %p92 = pneg %p86
      %p93 = scmp.eq.s32.totalorder %s16, 1
      %p94 = por %p92, %p93
      %p95 = scmp.ne.s32.totalorder %s87, %s90
      %p96 = scmp.eq.s32.totalorder %s16, 0
      %p97 = por %p95, %p96
      %p98 = scmp.ne.s32.totalorder %s87, %s90
      %p99 = scmp.eq.s32.totalorder %s21, 1
      %p100 = por %p98, %p99
      %p101 = scmp.ne.s32.totalorder %s90, %s91
      %p102 = scmp.eq.s32.totalorder %s21, 0
      %p103 = por %p101, %p102
      %p104 = scmp.ne.s32.totalorder %s90, %s91
      %p105 = scmp.eq.s32.totalorder %s22, 1
      %p106 = por %p104, %p105
      %p108 = scmp.ne.s32.totalorder %s91, %s107
      %p109 = scmp.eq.s32.totalorder %s22, 0
      %p110 = por %p108, %p109
      %s111 = ssub.s32 %s24, %s31
      %s112 = ssub.s32 %s23, %s35
      %s113 = sor.u32 %s111, %s112
      %p114 = scmp.eq.s32.totalorder %s113, 0
      %s116 = sadd.s32 %s115, 1
      %s117 = scalar_select %p114, %s115, %s116
      %p120 = pneg %p114
      %p121 = scmp.eq.s32.totalorder %s16, 1
      %p122 = por %p120, %p121
      %p123 = scmp.ne.s32.totalorder %s115, %s118
      %p124 = scmp.eq.s32.totalorder %s16, 0
      %p125 = por %p123, %p124
      %p126 = scmp.ne.s32.totalorder %s115, %s118
      %p127 = scmp.eq.s32.totalorder %s21, 1
      %p128 = por %p126, %p127
      %p129 = scmp.ne.s32.totalorder %s118, %s119
      %p130 = scmp.eq.s32.totalorder %s21, 0
      %p131 = por %p129, %p130
      %p132 = scmp.ne.s32.totalorder %s118, %s119
      %p133 = scmp.eq.s32.totalorder %s22, 1
      %p134 = por %p132, %p133
      %p136 = scmp.ne.s32.totalorder %s119, %s135
      %p137 = scmp.eq.s32.totalorder %s22, 0
      %p138 = por %p136, %p137
      %p139 = scmp.le.s32.totalorder 1, %s16
      %p140 = scmp.lt.s32.totalorder %s16, 3
      %p141 = pnand %p139, %p140
      %p142 = pneg %p141
      // Predicated region
      $region9: #{tpu_custom_call.1} parent=5 // pred_check
        _
      $region10: #{tpu_custom_call.1} parent=5 // pred_check_branch
        %144 = sbr.rel (%p141) target = $region12
      $region11: #{tpu_custom_call.1} parent=5 // pred_region
        %s145 = ssub.s32 %s16, 1
        // Predicated region
        $region13: #{tpu_custom_call.1} parent=11 // pred_check
          %p146 = pneg %p77
        $region14: #{tpu_custom_call.1} parent=11 // pred_check_branch
          %148 = sbr.rel (%p146) target = $region16
        $region15: #{tpu_custom_call.1} parent=11 // pred_region
          %s150 = ssub.s32 1024, 1024
          %151 = vsyncadd [#allocation6], %s150
          %s152 = sshll.u32 [#allocation5], 4
          %s153 = int_to_ptr.vmem [resolvable:$true] %s152
          %158 = dma.hbm_to_vmem [thread:$0]  %s1, 1024, %s153, [#allocation6], 64, 64, 4
        $region16: #{tpu_custom_call.1} parent=11 // pred_fallthru
          _
        // Predicated region
        $region17: #{tpu_custom_call.1} parent=11 // pred_check
          %p159 = pneg %p103
        $region18: #{tpu_custom_call.1} parent=11 // pred_check_branch
          %161 = sbr.rel (%p159) target = $region20
        $region19: #{tpu_custom_call.1} parent=11 // pred_region
          %s162 = smul.u32 4, %s25
          %s164 = ssub.s32 512, 512
          %165 = vsyncadd [#allocation6], %s164
          %s166 = smul.addr %s162, 128
          %s167 = scalar_lea.hbm %s2, %s166
          %s168 = sshll.u32 [#allocation7], 4
          %s169 = int_to_ptr.vmem [resolvable:$true] %s168
          %174 = dma.hbm_to_vmem [thread:$0]  %s167, 512, %s169, [#allocation6], 128, 128, 8
        $region20: #{tpu_custom_call.1} parent=11 // pred_fallthru
          _
      $region12: #{tpu_custom_call.1} parent=5 // pred_fallthru
        _
      %p175 = scmp.lt.s32.totalorder %s16, 2
      // Predicated region
      $region21: #{tpu_custom_call.1} parent=5 // pred_check
        %p176 = pneg %p175
      $region22: #{tpu_custom_call.1} parent=5 // pred_check_branch
        %178 = sbr.rel (%p176) target = $region24
      $region23: #{tpu_custom_call.1} parent=5 // pred_region
        // Predicated region
        $region25: #{tpu_custom_call.1} parent=23 // pred_check
          %p179 = pneg %p50
        $region26: #{tpu_custom_call.1} parent=23 // pred_check_branch
          %181 = sbr.rel (%p179) target = $region28
        $region27: #{tpu_custom_call.1} parent=23 // pred_region
          %s182 = sand.u32 %s40, 1
          %s183 = scalar_lea.sflag [#allocation3], %s182
          %s184 = sand.u32 %s40, 1
          %s185 = smul.addr %s184, 16
          %s186 = scalar_lea.vmem [#allocation2], %s185
          %s187 = smul.u32 4, %s23
          %s189 = ssub.s32 256, 256
          %190 = vsyncadd %s183, %s189
          %s191 = smul.addr %s24, 4
          %s192 = sadd.s32 %s187, %s191
          %s193 = smul.addr %s192, 64
          %s194 = scalar_lea.hbm %s0, %s193
          %s195 = sshll.u32 %s186, 4
          %s196 = int_to_ptr.vmem [resolvable:$true] %s195
          %201 = dma.hbm_to_vmem [thread:$0]  %s194, 256, %s196, %s183, 64, 64, 4
        $region28: #{tpu_custom_call.1} parent=23 // pred_fallthru
          _
      $region24: #{tpu_custom_call.1} parent=5 // pred_fallthru
        _
      %p202 = scmp.le.s32.totalorder 1, %s16
      %p203 = scmp.lt.s32.totalorder %s16, 3
      %p204 = pnand %p202, %p203
      %p205 = pneg %p204
      // Predicated region
      $region29: #{tpu_custom_call.1} parent=5 // pred_check
        _
      $region30: #{tpu_custom_call.1} parent=5 // pred_check_branch
        %207 = sbr.rel (%p204) target = $region32
      $region31: #{tpu_custom_call.1} parent=5 // pred_region
        %s208 = ssub.s32 %s16, 1
        %s209 = sand.u32 %s43, 1
        %s210 = scalar_lea.sflag [#allocation3], %s209
        %s211 = sand.u32 %s43, 1
        %s212 = smul.addr %s211, 16
        %s213 = scalar_lea.vmem [#allocation2], %s212
        // Predicated region
        $region33: #{tpu_custom_call.1} parent=31 // pred_check
          %p214 = pneg %p56
        $region34: #{tpu_custom_call.1} parent=31 // pred_check_branch
          %216 = sbr.rel (%p214) target = $region36
        $region35: #{tpu_custom_call.1} parent=31 // pred_region
          %217 = dma.done %s210, 256
        $region36: #{tpu_custom_call.1} parent=31 // pred_fallthru
          _
        // Predicated region
        $region37: #{tpu_custom_call.1} parent=31 // pred_check
          %p218 = pneg %p77
        $region38: #{tpu_custom_call.1} parent=31 // pred_check_branch
          %220 = sbr.rel (%p218) target = $region40
        $region39: #{tpu_custom_call.1} parent=31 // pred_region
          %221 = dma.done [#allocation6], 1024
        $region40: #{tpu_custom_call.1} parent=31 // pred_fallthru
          _
        // Predicated region
        $region41: #{tpu_custom_call.1} parent=31 // pred_check
          %p222 = pneg %p103
        $region42: #{tpu_custom_call.1} parent=31 // pred_check_branch
          %224 = sbr.rel (%p222) target = $region44
        $region43: #{tpu_custom_call.1} parent=31 // pred_region
          %225 = dma.done [#allocation6], 512
        $region44: #{tpu_custom_call.1} parent=31 // pred_fallthru
          _
        %s226 = sand.u32 %s43, 1
        %s227 = scalar_lea.sflag [#allocation3], %s226
        %s228 = sand.u32 %s43, 1
        %s229 = smul.addr %s228, 16
        %s230 = scalar_lea.vmem [#allocation2], %s229
        %p231 = pneg %p56
        %p232 = pneg %p53
        %p233 = pneg %p77
        %p234 = pneg %p74
        %p235 = pneg %p103
        %p236 = pneg %p100
        %p237 = pneg %p131
        %p238 = pneg %p128
        %s239 = sand.u32 %s118, 1
        %s240 = scalar_lea.sflag [#allocation4], %s239
        %s241 = sand.u32 %s118, 1
        %s242 = smul.addr %s241, 16
        %s243 = scalar_lea.vmem [#allocation8], %s242
        %s244 = smul.u32 4, %s25
        %s245 = smul.u32 4, %s25
        %s246 = smul.u32 4, %s25
        %v248 = vld [vmem:[%s213] sm:$0xf]
        %v249 = vld [vmem:[%s213 + $0x4] sm:$0xf]
        %v250 = vld [vmem:[%s213 + $0x8] sm:$0xf]
        %v251 = vld [vmem:[%s213 + $0xc] sm:$0xf]
        %v252 = vld [vmem:[#allocation5] sm:$0xf]
        %v253 = vld [vmem:[#allocation5 + $0x4] sm:$0xf]
        %v254 = vld [vmem:[#allocation5 + $0x8] sm:$0xf]
        %v255 = vld [vmem:[#allocation5 + $0xc] sm:$0xf]
        %v256 = vld [vmem:[#allocation5 + $0x10] sm:$0xf]
        %v257 = vld [vmem:[#allocation5 + $0x14] sm:$0xf]
        %v258 = vld [vmem:[#allocation5 + $0x18] sm:$0xf]
        %v259 = vld [vmem:[#allocation5 + $0x1c] sm:$0xf]
        %v260 = vld [vmem:[#allocation5 + $0x20] sm:$0xf]
        %v261 = vld [vmem:[#allocation5 + $0x24] sm:$0xf]
        %v262 = vld [vmem:[#allocation5 + $0x28] sm:$0xf]
        %v263 = vld [vmem:[#allocation5 + $0x2c] sm:$0xf]
        %v264 = vld [vmem:[#allocation5 + $0x30] sm:$0xf]
        %v265 = vld [vmem:[#allocation5 + $0x34] sm:$0xf]
        %v266 = vld [vmem:[#allocation5 + $0x38] sm:$0xf]
        %v267 = vld [vmem:[#allocation5 + $0x3c] sm:$0xf]
        %v268 = vld [vmem:[#allocation7] sm:$0xff]
        %v269 = vld [vmem:[#allocation7 + $0x8] sm:$0xff]
        %v270 = vld [vmem:[#allocation7 + $0x10] sm:$0xff]
        %v271 = vld [vmem:[#allocation7 + $0x18] sm:$0xff]
        %v276 = vunpack.c.l.b16 %v248
        %v277 = vunpack.c.l.b16 %v249
        %v278 = vunpack.c.l.b16 %v250
        %v279 = vunpack.c.l.b16 %v251
        %v280 = vpack.c.b16 %v277, %v276
        %v281 = vpack.c.b16 %v279, %v278
        %v300 = vunpack.c.l.b16 %v252
        %v301 = vunpack.c.l.b16 %v253
        %v302 = vunpack.c.l.b16 %v254
        %v303 = vunpack.c.l.b16 %v255
        %v304 = vunpack.c.l.b16 %v256
        %v305 = vunpack.c.l.b16 %v257
        %v306 = vunpack.c.l.b16 %v258
        %v307 = vunpack.c.l.b16 %v259
        %v308 = vunpack.c.l.b16 %v260
        %v309 = vunpack.c.l.b16 %v261
        %v310 = vunpack.c.l.b16 %v262
        %v311 = vunpack.c.l.b16 %v263
        %v312 = vunpack.c.l.b16 %v264
        %v313 = vunpack.c.l.b16 %v265
        %v314 = vunpack.c.l.b16 %v266
        %v315 = vunpack.c.l.b16 %v267
        %v316 = vpack.c.b16 %v301, %v300
        %v317 = vpack.c.b16 %v303, %v302
        %v318 = vpack.c.b16 %v305, %v304
        %v319 = vpack.c.b16 %v307, %v306
        %v320 = vpack.c.b16 %v309, %v308
        %v321 = vpack.c.b16 %v311, %v310
        %v322 = vpack.c.b16 %v313, %v312
        %v323 = vpack.c.b16 %v315, %v314
        %332 = vmatprep.subr.bf16.mxu0 0
        %333 = vmatpush1.bf16.msra.mxu0 %v323
        %334 = vmatprep.subr.bf16.mxu0 0
        %335 = vmatpush1.bf16.msra.mxu0 %v322
        %336 = vmatprep.subr.bf16.mxu0 0
        %337 = vmatpush1.bf16.msra.mxu0 %v321
        %338 = vmatprep.subr.bf16.mxu0 0
        %339 = vmatpush1.bf16.msra.mxu0 %v320
        %340 = vmatprep.subr.bf16.mxu0 0
        %341 = vmatpush1.bf16.msra.mxu0 %v319
        %342 = vmatprep.subr.bf16.mxu0 0
        %343 = vmatpush1.bf16.msra.mxu0 %v318
        %344 = vmatprep.subr.bf16.mxu0 0
        %345 = vmatpush1.bf16.msra.mxu0 %v317
        %346 = vmatprep.subr.bf16.mxu0 0
        %347 = vmatpush1.bf16.msra.mxu0 %v316
        %348 = vmatprep.subr.bf16.mxu0 0
        %349 = vmatpush2.bf16.msra.mxu0 0
        %350 = vmatprep.subr.bf16.mxu0 0
        %351 = vmatpush2.bf16.msra.mxu0 0
        %352 = vmatprep.subr.bf16.mxu0 0
        %353 = vmatpush2.bf16.msra.mxu0 0
        %354 = vmatprep.subr.bf16.mxu0 0
        %355 = vmatpush2.bf16.msra.mxu0 0
        %356 = vmatprep.subr.bf16.mxu0 0
        %357 = vmatpush2.bf16.msra.mxu0 0
        %358 = vmatprep.subr.bf16.mxu0 0
        %359 = vmatpush2.bf16.msra.mxu0 0
        %360 = vmatprep.subr.bf16.mxu0 0
        %361 = vmatpush2.bf16.msra.mxu0 0
        %362 = vmatprep.subr.bf16.mxu0 0
        %363 = vmatpush2.bf16.msra.mxu0 0
        %364 = vmatprep.mubr.bf16.mxu0 0
        %365 = vmatmul.mubr.bf16.gmra.mxu0 %v280
        %v366 = vpop.f32.mrf.mxu0
        %v367 = vadd.f32 %v268, %v366
        %v368 = vpop.f32.mrf.mxu0
        %v369 = vpop.f32.mrf.mxu0
        %v370 = vadd.f32 %v269, %v369
        %v371 = vpop.f32.mrf.mxu0
        %372 = vmatprep.mubr.bf16.mxu0 0
        %373 = vmatmul.mubr.bf16.gmra.mxu0 %v281
        %v374 = vpop.f32.mrf.mxu0
        %v375 = vadd.f32 %v270, %v374
        %v376 = vpop.f32.mrf.mxu0
        %v377 = vpop.f32.mrf.mxu0
        %v378 = vadd.f32 %v271, %v377
        %v379 = vpop.f32.mrf.mxu0
        %380 = vdwg.mxu0
        %v381 = vpack.c.bf16 %v370, %v367
        %v382 = vpack.c.bf16 %v378, %v375
        %v385 = vunpack.c.l.b16 %v381
        %v386 = vunpack.c.h.b16 %v381
        %v387 = vunpack.c.l.b16 %v382
        %v388 = vunpack.c.h.b16 %v382
        %v389 = vpack.c.b16 %v385, %v385
        %v390 = vpack.c.b16 %v386, %v386
        %v391 = vpack.c.b16 %v387, %v387
        %v392 = vpack.c.b16 %v388, %v388
        %397 = vst [vmem:[%s243] sm:$0xf] %v389
        %398 = vst [vmem:[%s243 + $0x4] sm:$0xf] %v390
        %399 = vst [vmem:[%s243 + $0x8] sm:$0xf] %v391
        %400 = vst [vmem:[%s243 + $0xc] sm:$0xf] %v392
        %s401 = sand.u32 %s118, 1
        %s402 = scalar_lea.sflag [#allocation4], %s401
        %s403 = sand.u32 %s118, 1
        %s404 = smul.addr %s403, 16
        %s405 = scalar_lea.vmem [#allocation8], %s404
        // Predicated region
        $region45: #{tpu_custom_call.1} parent=31 // pred_check
          %p406 = pneg %p128
        $region46: #{tpu_custom_call.1} parent=31 // pred_check_branch
          %408 = sbr.rel (%p406) target = $region48
        $region47: #{tpu_custom_call.1} parent=31 // pred_region
          %s409 = smul.u32 4, %s25
          %s411 = ssub.s32 256, 256
          %412 = vsyncadd %s402, %s411
          %s413 = smul.addr %s26, 4
          %s414 = sadd.s32 %s409, %s413
          %s415 = smul.addr %s414, 64
          %s416 = scalar_lea.hbm %s3, %s415
          %s417 = sshll.u32 %s405, 4
          %s418 = int_to_ptr.vmem [resolvable:$true] %s417
          %423 = dma.vmem_to_hbm [thread:$0]  %s418, 256, %s416, %s402, 64, 64, 4
        $region48: #{tpu_custom_call.1} parent=31 // pred_fallthru
          _
      $region32: #{tpu_custom_call.1} parent=5 // pred_fallthru
        _
      %p424 = scmp.le.s32.totalorder 2, %s16
      // Predicated region
      $region49: #{tpu_custom_call.1} parent=5 // pred_check
        %p425 = pneg %p424
      $region50: #{tpu_custom_call.1} parent=5 // pred_check_branch
        %427 = sbr.rel (%p425) target = $region52
      $region51: #{tpu_custom_call.1} parent=5 // pred_region
        %s428 = ssub.s32 %s16, 2
        // Predicated region
        $region53: #{tpu_custom_call.1} parent=51 // pred_check
          %p429 = pneg %p134
        $region54: #{tpu_custom_call.1} parent=51 // pred_check_branch
          %431 = sbr.rel (%p429) target = $region56
        $region55: #{tpu_custom_call.1} parent=51 // pred_region
          %s432 = sand.u32 %s119, 1
          %s433 = scalar_lea.sflag [#allocation4], %s432
          %s434 = sand.u32 %s119, 1
          %s435 = smul.addr %s434, 16
          %s436 = scalar_lea.vmem [#allocation8], %s435
          %437 = dma.done %s433, 256
        $region56: #{tpu_custom_call.1} parent=51 // pred_fallthru
          _
      $region52: #{tpu_custom_call.1} parent=5 // pred_fallthru
        _
    $region6: #{tpu_custom_call.1} parent=1 // loop_footer
      %s20 = sadd.s32 1, %s16
    $region7: #{tpu_custom_call.1} parent=1 // loop_footer_branch
      %15 = sbr.rel target = $region3
    $region8: #{tpu_custom_call.1} parent=1 // loop_exit
      _
    %438 = vsyncpa [#allocation3], 1
    %s439 = scalar_lea.sflag [#allocation3], 1
    %440 = vsyncpa %s439, 1
    %441 = vsyncpa [#allocation6], 1
    %442 = vsyncpa [#allocation4], 1
    %s443 = scalar_lea.sflag [#allocation4], 1
    %444 = vsyncpa %s443, 1

</llo_original>
